<compile_context>
chip_gen: v6e
topology: v6e:2x2x1
jax: 0.10.0
libtpu: 0.0.40
codegen_flags: <defaults>
</compile_context>

<pallas_src>
import functools

import jax
import jax.numpy as jnp
from jax.experimental import pallas as pl
from jax.experimental.pallas import tpu as pltpu

_HIDDEN = 256
_LANE = 128
_BF16_SUBLANE = 16
_BM_CANDIDATES = (512, 256, 128, 64, 32, 16)


def _round_up(x, m):
    return (x + m - 1) // m * m


def _vmem_budget_bytes():
    """Generation-aware VMEM budget: ~70% of physical capacity (64 MiB v7x, 128 MiB v5e/v6e)."""
    cap = 64 * 1024 * 1024  # conservative default (v7x per-TC VMEM)
    try:
        cap = int(pltpu.get_tpu_info().vmem_capacity_bytes)
    except Exception:
        pass
    return max(int(0.7 * cap), 32 * 1024 * 1024)


def _resident_spec(block_shape):
    """Constant-index (VMEM-resident) BlockSpec; single pipeline buffer when supported."""
    idx = lambda *args: tuple(0 for _ in block_shape)
    try:
        return pl.BlockSpec(block_shape, idx, pipeline_mode=pl.Buffered(1))
    except TypeError:  # older BlockSpec signature without pipeline_mode
        return pl.BlockSpec(block_shape, idx)


# ---------------------------------------------------------------------------
# Kernels
# ---------------------------------------------------------------------------
def _mlp_resident_kernel(x_ref, w1_ref, b1_ref, w2_ref, b2_ref, o_ref):
    """Everything VMEM-resident; one batch tile per grid step. (bm,S)@(S,H) -> (bm,H)@(H,S)."""
    h = jnp.dot(x_ref[...], w1_ref[...], preferred_element_type=jnp.float32)
    h = (h + b1_ref[...]).astype(w2_ref.dtype)
    y = jnp.dot(h, w2_ref[...], preferred_element_type=jnp.float32) + b2_ref[...]
    o_ref[...] = y.astype(o_ref.dtype)


def _mlp_coltiled_kernel(x_ref, w1_ref, b1_ref, w2_ref, b2_ref, o_ref, h_ref):
    """Fallback for large S: W2/b2/output column-tiled over the inner (arbitrary) j axis.
    h is computed once per batch tile (j == 0) into a bf16 VMEM scratch and reused."""
    j = pl.program_id(1)

    @pl.when(j == 0)
    def _():
        h = jnp.dot(x_ref[...], w1_ref[...], preferred_element_type=jnp.float32)
        h_ref[...] = (h + b1_ref[...]).astype(h_ref.dtype)

    y = jnp.dot(h_ref[...], w2_ref[...], preferred_element_type=jnp.float32) + b2_ref[...]
    o_ref[...] = y.astype(o_ref.dtype)


# ---------------------------------------------------------------------------
# VMEM budgeting / tile selection
# ---------------------------------------------------------------------------
def _vmem_resident(bm, Sp, Hp, cbytes):
    return (2 * bm * Sp * cbytes        # x tile (double-buffered)
            + Sp * Hp * cbytes          # W1 (resident, single buffer)
            + Hp * 4                    # b1
            + Hp * Sp * cbytes          # W2 (resident, single buffer)
            + Sp * 4                    # b2
            + 2 * bm * Sp * 4)          # out tile (double-buffered, f32)


def _vmem_coltiled(bm, Sp, Hp, tn, cbytes):
    return (2 * bm * Sp * cbytes        # x tile
            + Sp * Hp * cbytes          # W1 (resident, single buffer)
            + Hp * 4                    # b1
            + 2 * Hp * tn * cbytes      # W2 column tile
            + 2 * tn * 4                # b2 column tile
            + 2 * bm * tn * 4           # out tile (f32)
            + bm * Hp * cbytes)         # h scratch (compute dtype)


def _pick_bm(B, fits):
    """Largest batch tile (multiple of 16 for bf16 sublane packing) that fits VMEM, keeping
    at least 2 batch tiles once B >= 32 so both v7x TensorCores get 'parallel' work."""
    if B <= _BF16_SUBLANE:
        return _BF16_SUBLANE
    cap = _round_up(B, _BF16_SUBLANE)
    if B >= 2 * _BF16_SUBLANE:
        cap = min(cap, _round_up((B + 1) // 2, _BF16_SUBLANE))
    for bm in _BM_CANDIDATES:
        if bm <= cap and fits(bm):
            return bm
    return _BF16_SUBLANE


def _pick_col_tile(Sp, bm, Hp, cbytes, budget):
    cands = [t for t in (2048, 1024, 512, 256, 128) if t <= Sp and Sp % t == 0] or [Sp]
    for tn in cands:  # largest first
        if _vmem_coltiled(bm, Sp, Hp, tn, cbytes) <= budget:
            return tn
    return cands[-1]


# ---------------------------------------------------------------------------
# Parameters
# ---------------------------------------------------------------------------
def init_params(key, dim, hidden=_HIDDEN, dtype=jnp.float32):
    """PyTorch-style uniform(+/- 1/sqrt(fan_in)) init; weights stored (in, out) so the
    kernel does plain x @ W."""
    size = dim[0] * dim[1]
    k1, k2, k3, k4 = jax.random.split(key, 4)
    bound1 = 1.0 / jnp.sqrt(size)
    bound2 = 1.0 / jnp.sqrt(hidden)
    w1 = jax.random.uniform(k1, (size, hidden), dtype, -bound1, bound1)
    b1 = jax.random.uniform(k2, (1, hidden), dtype, -bound1, bound1)
    w2 = jax.random.uniform(k3, (hidden, size), dtype, -bound2, bound2)
    b2 = jax.random.uniform(k4, (1, size), dtype, -bound2, bound2)
    return w1, b1, w2, b2


def prepare_params(w1, b1, w2, b2, *, dim, compute_dtype=jnp.bfloat16):
    """Pad to lane-aligned (multiples of 128) shapes and cast weights to the compute dtype
    ONCE, outside the jitted forward, so no per-call f32->bf16 weight casts hit HBM."""
    S = dim[0] * dim[1]
    H = w1.shape[1]
    Sp = _round_up(S, _LANE)
    Hp = _round_up(H, _LANE)
    w1p = jnp.zeros((Sp, Hp), compute_dtype).at[:S, :H].set(w1.astype(compute_dtype))
    b1p = jnp.zeros((1, Hp), jnp.float32).at[:, :H].set(b1.reshape(1, H).astype(jnp.float32))
    w2p = jnp.zeros((Hp, Sp), compute_dtype).at[:H, :S].set(w2.astype(compute_dtype))
    b2p = jnp.zeros((1, Sp), jnp.float32).at[:, :S].set(b2.reshape(1, S).astype(jnp.float32))
    return w1p, b1p, w2p, b2p


# ---------------------------------------------------------------------------
# Forward
# ---------------------------------------------------------------------------
@functools.partial(jax.jit, static_argnames=("dim",))
def linear_regression_forward(x, w1c, b1f, w2c, b2f, *, dim):
    """x: (B, dim0, dim1) f32 -> (B, dim0, dim1) f32, replicating the PyTorch forward.
    w1c/w2c are compute-dtype (bf16) lane-padded weights, b1f/b2f are f32 lane-padded biases
    (see prepare_params)."""
    B = x.shape[0]
    S = dim[0] * dim[1]
    Sp, Hp = w1c.shape
    compute_dtype = w1c.dtype
    cbytes = jnp.dtype(compute_dtype).itemsize
    budget = _vmem_budget_bytes()

    # ---- activations: reshape, lane-pad, batch-pad, cast to compute dtype ----
    x2d = x.reshape(B, S)
    if Sp != S:
        x2d = jnp.pad(x2d, ((0, 0), (0, Sp - S)))

    resident_fits = _vmem_resident(_BF16_SUBLANE, Sp, Hp, cbytes) <= budget
    if resident_fits:
        fits = lambda m: _vmem_resident(m, Sp, Hp, cbytes) <= budget
    else:
        fits = lambda m: _vmem_coltiled(m, Sp, Hp, _LANE, cbytes) <= budget
    bm = _pick_bm(B, fits)
    Bp = _round_up(B, bm)
    if Bp != B:
        x2d = jnp.pad(x2d, ((0, Bp - B), (0, 0)))
    xc = x2d.astype(compute_dtype)

    n_btiles = Bp // bm

    if resident_fits:
        # ---------------- resident fast path: 1-D grid over batch tiles ----------------
        est = _vmem_resident(bm, Sp, Hp, cbytes)
        cost = pl.CostEstimate(
            flops=4 * Bp * Sp * Hp,
            transcendentals=0,
            bytes_accessed=(Bp * Sp * cbytes        # x
                            + Sp * Hp * cbytes      # W1 (read once)
                            + Hp * Sp * cbytes      # W2 (read once)
                            + Hp * 4 + Sp * 4       # biases
                            + Bp * Sp * 4),         # out
        )
        out2d = pl.pallas_call(
            _mlp_resident_kernel,
            out_shape=jax.ShapeDtypeStruct((Bp, Sp), jnp.float32),
            grid_spec=pltpu.PrefetchScalarGridSpec(
                num_scalar_prefetch=0,
                grid=(n_btiles,),
                in_specs=[
                    pl.BlockSpec((bm, Sp), lambda i: (i, 0)),   # x batch tile
                    _resident_spec((Sp, Hp)),                   # W1 (VMEM-resident)
                    _resident_spec((1, Hp)),                    # b1
                    _resident_spec((Hp, Sp)),                   # W2 (VMEM-resident)
                    _resident_spec((1, Sp)),                    # b2
                ],
                out_specs=pl.BlockSpec((bm, Sp), lambda i: (i, 0)),
            ),
            compiler_params=pltpu.CompilerParams(
                dimension_semantics=("parallel",),
                vmem_limit_bytes=int(min(max(2 * est, 32 * 1024 * 1024), budget)),
            ),
            cost_estimate=cost,
        )(xc, w1c, b1f, w2c, b2f)
    else:
        # -------------- fallback: column-tiled W2/b2/output for large S ----------------
        # TODO(synk): add a K-tiled (grid axis over Sp with f32 accumulation) path for inputs
        # so large that even a single resident W1 overflows VMEM (v7x's 64 MiB hits this first).
        tn = _pick_col_tile(Sp, bm, Hp, cbytes, budget)
        est = _vmem_coltiled(bm, Sp, Hp, tn, cbytes)
        cost = pl.CostEstimate(
            flops=4 * Bp * Sp * Hp,
            transcendentals=0,
            bytes_accessed=(Bp * Sp * cbytes                       # x
                            + Sp * Hp * cbytes + Hp * 4            # W1 / b1 (read once)
                            + n_btiles * (Hp * Sp * cbytes + Sp * 4)  # W2/b2 re-streamed per batch tile
                            + Bp * Sp * 4),                        # out
        )
        out2d = pl.pallas_call(
            _mlp_coltiled_kernel,
            out_shape=jax.ShapeDtypeStruct((Bp, Sp), jnp.float32),
            grid_spec=pltpu.PrefetchScalarGridSpec(
                num_scalar_prefetch=0,
                grid=(n_btiles, Sp // tn),
                in_specs=[
                    pl.BlockSpec((bm, Sp), lambda i, j: (i, 0)),   # x batch tile (const over j)
                    _resident_spec((Sp, Hp)),                      # W1 (VMEM-resident)
                    _resident_spec((1, Hp)),                       # b1
                    pl.BlockSpec((Hp, tn), lambda i, j: (0, j)),   # W2 column tile
                    pl.BlockSpec((1, tn), lambda i, j: (0, j)),    # b2 column tile
                ],
                out_specs=pl.BlockSpec((bm, tn), lambda i, j: (i, j)),
                scratch_shapes=[pltpu.VMEM((bm, Hp), compute_dtype)],  # bf16 h scratch
            ),
            compiler_params=pltpu.CompilerParams(
                dimension_semantics=("parallel", "arbitrary"),
                vmem_limit_bytes=int(min(max(2 * est, 32 * 1024 * 1024), budget)),
            ),
            cost_estimate=cost,
        )(xc, w1c, b1f, w2c, b2f)

    return out2d[:B, :S].reshape(B, dim[0], dim[1])


if __name__ == "__main__":
    key = jax.random.PRNGKey(0)
    dim = (16, 16)          # self.dim -> size = 256
    B = 2

    kx, kp = jax.random.split(key)
    x = jax.random.normal(kx, (B, dim[0], dim[1]), jnp.float32)
    w1, b1, w2, b2 = init_params(kp, dim)
    w1c, b1f, w2c, b2f = prepare_params(w1, b1, w2, b2, dim=dim)

    out = linear_regression_forward(x, w1c, b1f, w2c, b2f, dim=dim)
    out = jax.block_until_ready(out)

    # Plain-JAX reference using the same bf16-compute / f32-accumulate path.
    xb = x.reshape(B, -1).astype(jnp.bfloat16)
    h = jnp.dot(xb, w1.astype(jnp.bfloat16),
                preferred_element_type=jnp.float32) + b1.reshape(1, -1)
    ref = jnp.dot(h.astype(jnp.bfloat16), w2.astype(jnp.bfloat16),
                  preferred_element_type=jnp.float32) + b2.reshape(1, -1)
    ref = ref.reshape(B, dim[0], dim[1])

    assert out.shape == (B, dim[0], dim[1])
    err = float(jnp.max(jnp.abs(out - ref)))
    assert jnp.allclose(out, ref, atol=1e-2, rtol=1e-2), f"max abs err = {err}"

    print("KERNEL_OK")
</pallas_src>

<mosaic_0001>
module attributes {stable_mosaic.version = 11 : i64} {
  func.func @_mlp_resident_kernel(%arg0: i32, %arg1: memref<16x256xbf16, #tpu.memory_space<vmem>>, %arg2: memref<256x256xbf16, #tpu.memory_space<vmem>>, %arg3: memref<1x256xf32, #tpu.memory_space<vmem>>, %arg4: memref<256x256xbf16, #tpu.memory_space<vmem>>, %arg5: memref<1x256xf32, #tpu.memory_space<vmem>>, %arg6: memref<16x256xf32, #tpu.memory_space<vmem>>) attributes {dimension_semantics = [#tpu.dimension_semantics<parallel>], iteration_bounds = array<i64: 1>, scalar_prefetch = 0 : i64, scratch_operands = 0 : i64, tpu.core_type = #tpu.core_type<tc>, window_params = [{transform_indices = @transform_0, window_bounds = array<i64: 16, 256>}, {pipeline_mode = #tpu.pipeline_mode<synchronous>, transform_indices = @transform_1, window_bounds = array<i64: 256, 256>}, {pipeline_mode = #tpu.pipeline_mode<synchronous>, transform_indices = @transform_2, window_bounds = array<i64: 1, 256>}, {pipeline_mode = #tpu.pipeline_mode<synchronous>, transform_indices = @transform_3, window_bounds = array<i64: 256, 256>}, {pipeline_mode = #tpu.pipeline_mode<synchronous>, transform_indices = @transform_4, window_bounds = array<i64: 1, 256>}, {transform_indices = @transform_5, window_bounds = array<i64: 16, 256>}]} {
    %c0 = arith.constant 0 : index
    %c0_0 = arith.constant 0 : index
    %0 = vector.load %arg1[%c0, %c0_0] : memref<16x256xbf16, #tpu.memory_space<vmem>>, vector<16x256xbf16>
    %c0_1 = arith.constant 0 : index
    %c0_2 = arith.constant 0 : index
    %1 = vector.load %arg2[%c0_1, %c0_2] : memref<256x256xbf16, #tpu.memory_space<vmem>>, vector<256x256xbf16>
    %cst = arith.constant dense<0.000000e+00> : vector<16x256xf32>
    %2 = tpu.matmul %0, %1, %cst {dimension_numbers = #tpu.dot_dimension_numbers<[1], [0], [0], [1], [0, 0, 1, 1], [], []>} : vector<16x256xbf16>, vector<256x256xbf16>, vector<16x256xf32> -> vector<16x256xf32>
    %c0_3 = arith.constant 0 : index
    %c0_4 = arith.constant 0 : index
    %3 = vector.load %arg3[%c0_3, %c0_4] : memref<1x256xf32, #tpu.memory_space<vmem>>, vector<1x256xf32>
    %4 = vector.broadcast %3 : vector<1x256xf32> to vector<16x256xf32>
    %5 = arith.addf %2, %4 : vector<16x256xf32>
    %6 = arith.truncf %5 : vector<16x256xf32> to vector<16x256xbf16>
    %c0_5 = arith.constant 0 : index
    %c0_6 = arith.constant 0 : index
    %7 = vector.load %arg4[%c0_5, %c0_6] : memref<256x256xbf16, #tpu.memory_space<vmem>>, vector<256x256xbf16>
    %cst_7 = arith.constant dense<0.000000e+00> : vector<16x256xf32>
    %8 = tpu.matmul %6, %7, %cst_7 {dimension_numbers = #tpu.dot_dimension_numbers<[1], [0], [0], [1], [0, 0, 1, 1], [], []>} : vector<16x256xbf16>, vector<256x256xbf16>, vector<16x256xf32> -> vector<16x256xf32>
    %c0_8 = arith.constant 0 : index
    %c0_9 = arith.constant 0 : index
    %9 = vector.load %arg5[%c0_8, %c0_9] : memref<1x256xf32, #tpu.memory_space<vmem>>, vector<1x256xf32>
    %10 = vector.broadcast %9 : vector<1x256xf32> to vector<16x256xf32>
    %11 = arith.addf %8, %10 : vector<16x256xf32>
    %c0_10 = arith.constant 0 : index
    %c0_11 = arith.constant 0 : index
    %12 = vector.load %arg6[%c0_10, %c0_11] : memref<16x256xf32, #tpu.memory_space<vmem>>, vector<16x256xf32>
    tpu.vector_store %arg6[%c0_10, %c0_11], %11 {strides = array<i32>} : memref<16x256xf32, #tpu.memory_space<vmem>>, vector<16x256xf32>,
    return
  }
  func.func @transform_0(%arg0: i32) -> (i32, i32) {
    %c0_i32 = arith.constant 0 : i32
    %c0_i32_0 = arith.constant 0 : i32
    return %arg0, %c0_i32 : i32, i32
  }
  func.func @transform_1(%arg0: i32) -> (i32, i32) {
    %c0_i32 = arith.constant 0 : i32
    %c0_i32_0 = arith.constant 0 : i32
    %c0_i32_1 = arith.constant 0 : i32
    return %c0_i32, %c0_i32_0 : i32, i32
  }
  func.func @transform_2(%arg0: i32) -> (i32, i32) {
    %c0_i32 = arith.constant 0 : i32
    %c0_i32_0 = arith.constant 0 : i32
    %c0_i32_1 = arith.constant 0 : i32
    return %c0_i32, %c0_i32_0 : i32, i32
  }
  func.func @transform_3(%arg0: i32) -> (i32, i32) {
    %c0_i32 = arith.constant 0 : i32
    %c0_i32_0 = arith.constant 0 : i32
    %c0_i32_1 = arith.constant 0 : i32
    return %c0_i32, %c0_i32_0 : i32, i32
  }
  func.func @transform_4(%arg0: i32) -> (i32, i32) {
    %c0_i32 = arith.constant 0 : i32
    %c0_i32_0 = arith.constant 0 : i32
    %c0_i32_1 = arith.constant 0 : i32
    return %c0_i32, %c0_i32_0 : i32, i32
  }
  func.func @transform_5(%arg0: i32) -> (i32, i32) {
    %c0_i32 = arith.constant 0 : i32
    %c0_i32_0 = arith.constant 0 : i32
    return %arg0, %c0_i32 : i32, i32
  }
}

</mosaic_0001>

<llo_original>
// kernel: linear_regression_forward.1
$region0: #{linear_regression_forward.1}
  #allocation0 [shape = 'u32[]', space=smem, size = 0x4, offset = 0x4, fixed_abs, tag = 'smem constant byte address 0x4 - core index']
  #allocation1 [shape = 'u32[144,128]{1,0:T(1,128)}', space=vmem, size = 0x12000, scoped, tag = 'internal scratch']
  %s0 = inlined_call_operand.vmem [shape: bf16[16,256], index: 0, kind: input, shape index: {}]
  %s1 = inlined_call_operand.hbm [shape: bf16[256,256], index: 1, kind: input, shape index: {}]
  %s2 = inlined_call_operand.vmem [shape: f32[1,256], index: 2, kind: input, shape index: {}]
  %s3 = inlined_call_operand.hbm [shape: bf16[256,256], index: 3, kind: input, shape index: {}]
  %s4 = inlined_call_operand.vmem [shape: f32[1,256], index: 4, kind: input, shape index: {}]
  %s5 = inlined_call_operand.vmem [shape: f32[16,256], index: 5, kind: output, shape index: {}]
  %s6 = sld [smem:[#allocation0]]
  $region38: #{linear_regression_forward.1} parent=0
    _
  %s8 = ssub.s32 1, %s6
  %s9 = scalar_select 0, %s8, %s6
  $region1: #{linear_regression_forward.1} parent=0
    #allocation2 [shape = 'u8[131072]{0}', space=vmem, size = 0x20000, scoped, tag = 'input window, operand 1, single buffered']
    #allocation3 [shape = 's32[1]{0}', space=sflag, size = 0x4, scoped, tag = 'scoped memory for linear_regression_forward.1']
    #allocation4 [shape = 'u8[131072]{0}', space=vmem, size = 0x20000, scoped, tag = 'input window, operand 3, single buffered']
    #allocation5 [shape = 's32[1]{0}', space=sflag, size = 0x4, scoped, tag = 'scoped memory for linear_regression_forward.1']
    %10 = vsyncpa [#allocation3], 0
    %11 = vsyncpa [#allocation5], 0
    // Predicated region
    $region2: #{linear_regression_forward.1} parent=1 // pred_check
      _
    $region3: #{linear_regression_forward.1} parent=1 // pred_check_branch
      %13 = sbr.rel (0) target = $region5
    $region4: #{linear_regression_forward.1} parent=1 // pred_region
      _
    $region5: #{linear_regression_forward.1} parent=1 // pred_fallthru
      _
    // Predicated region
    $region6: #{linear_regression_forward.1} parent=1 // pred_check
      _
    $region7: #{linear_regression_forward.1} parent=1 // pred_check_branch
      %15 = sbr.rel (0) target = $region9
    $region8: #{linear_regression_forward.1} parent=1 // pred_region
      %s17 = ssub.s32 4096, 4096
      %18 = vsyncadd [#allocation3], %s17
      %s19 = sshll.u32 [#allocation2], 4
      %s20 = int_to_ptr.vmem [resolvable:$true] %s19
      %25 = dma.hbm_to_vmem [thread:$0]  %s1, 4096, %s20, [#allocation3], 128, 128, 8
    $region9: #{linear_regression_forward.1} parent=1 // pred_fallthru
      _
    // Predicated region
    $region10: #{linear_regression_forward.1} parent=1 // pred_check
      _
    $region11: #{linear_regression_forward.1} parent=1 // pred_check_branch
      %27 = sbr.rel (0) target = $region13
    $region12: #{linear_regression_forward.1} parent=1 // pred_region
      _
    $region13: #{linear_regression_forward.1} parent=1 // pred_fallthru
      _
    // Predicated region
    $region14: #{linear_regression_forward.1} parent=1 // pred_check
      _
    $region15: #{linear_regression_forward.1} parent=1 // pred_check_branch
      %29 = sbr.rel (0) target = $region17
    $region16: #{linear_regression_forward.1} parent=1 // pred_region
      %s31 = ssub.s32 4096, 4096
      %32 = vsyncadd [#allocation5], %s31
      %s33 = sshll.u32 [#allocation4], 4
      %s34 = int_to_ptr.vmem [resolvable:$true] %s33
      %39 = dma.hbm_to_vmem [thread:$0]  %s3, 4096, %s34, [#allocation5], 128, 128, 8
    $region17: #{linear_regression_forward.1} parent=1 // pred_fallthru
      _
    // Predicated region
    $region18: #{linear_regression_forward.1} parent=1 // pred_check
      _
    $region19: #{linear_regression_forward.1} parent=1 // pred_check_branch
      %41 = sbr.rel (0) target = $region21
    $region20: #{linear_regression_forward.1} parent=1 // pred_region
      _
    $region21: #{linear_regression_forward.1} parent=1 // pred_fallthru
      _
    // Predicated region
    $region22: #{linear_regression_forward.1} parent=1 // pred_check
      _
    $region23: #{linear_regression_forward.1} parent=1 // pred_check_branch
      %43 = sbr.rel (0) target = $region25
    $region24: #{linear_regression_forward.1} parent=1 // pred_region
      %44 = dma.done [#allocation3], 4096
    $region25: #{linear_regression_forward.1} parent=1 // pred_fallthru
      _
    // Predicated region
    $region26: #{linear_regression_forward.1} parent=1 // pred_check
      _
    $region27: #{linear_regression_forward.1} parent=1 // pred_check_branch
      %46 = sbr.rel (0) target = $region29
    $region28: #{linear_regression_forward.1} parent=1 // pred_region
      %47 = dma.done [#allocation5], 4096
    $region29: #{linear_regression_forward.1} parent=1 // pred_fallthru
      _
    %v48 = vld [vmem:[%s0] sm:$0xff]
    %v49 = vld [vmem:[%s0 + $0x8] sm:$0xff]
    %v50 = vld [vmem:[#allocation2] sm:$0xff]
    %v51 = vld [vmem:[#allocation2 + $0x8] sm:$0xff]
    %v52 = vld [vmem:[#allocation2 + $0x10] sm:$0xff]
    %v53 = vld [vmem:[#allocation2 + $0x18] sm:$0xff]
    %v54 = vld [vmem:[#allocation2 + $0x20] sm:$0xff]
    %v55 = vld [vmem:[#allocation2 + $0x28] sm:$0xff]
    %v56 = vld [vmem:[#allocation2 + $0x30] sm:$0xff]
    %v57 = vld [vmem:[#allocation2 + $0x38] sm:$0xff]
    %v58 = vld [vmem:[#allocation2 + $0x40] sm:$0xff]
    %v59 = vld [vmem:[#allocation2 + $0x48] sm:$0xff]
    %v60 = vld [vmem:[#allocation2 + $0x50] sm:$0xff]
    %v61 = vld [vmem:[#allocation2 + $0x58] sm:$0xff]
    %v62 = vld [vmem:[#allocation2 + $0x60] sm:$0xff]
    %v63 = vld [vmem:[#allocation2 + $0x68] sm:$0xff]
    %v64 = vld [vmem:[#allocation2 + $0x70] sm:$0xff]
    %v65 = vld [vmem:[#allocation2 + $0x78] sm:$0xff]
    %v66 = vld [vmem:[#allocation2 + $0x80] sm:$0xff]
    %v67 = vld [vmem:[#allocation2 + $0x88] sm:$0xff]
    %v68 = vld [vmem:[#allocation2 + $0x90] sm:$0xff]
    %v69 = vld [vmem:[#allocation2 + $0x98] sm:$0xff]
    %v70 = vld [vmem:[#allocation2 + $0xa0] sm:$0xff]
    %v71 = vld [vmem:[#allocation2 + $0xa8] sm:$0xff]
    %v72 = vld [vmem:[#allocation2 + $0xb0] sm:$0xff]
    %v73 = vld [vmem:[#allocation2 + $0xb8] sm:$0xff]
    %v74 = vld [vmem:[#allocation2 + $0xc0] sm:$0xff]
    %v75 = vld [vmem:[#allocation2 + $0xc8] sm:$0xff]
    %v76 = vld [vmem:[#allocation2 + $0xd0] sm:$0xff]
    %v77 = vld [vmem:[#allocation2 + $0xd8] sm:$0xff]
    %v78 = vld [vmem:[#allocation2 + $0xe0] sm:$0xff]
    %v79 = vld [vmem:[#allocation2 + $0xe8] sm:$0xff]
    %v80 = vld [vmem:[#allocation2 + $0xf0] sm:$0xff]
    %v81 = vld [vmem:[#allocation2 + $0xf8] sm:$0xff]
    %v82 = vld [vmem:[%s2] sm:$0x3]
    %v84 = vlaneseq
    %v85 = vshrl.u32 %v84, 7
    %v86 = vsub.s32 0, %v85
    %v87 = vrot.slane %v82, %v86
    %v88 = vlaneseq
    %v89 = vshrl.u32 %v88, 7
    %v90 = vsub.s32 1, %v89
    %v91 = vrot.slane %v82, %v90
    %v96 = vunpack.c.l.b16 %v48
    %v97 = vunpack.c.h.b16 %v48
    %v98 = vunpack.c.l.b16 %v49
    %v99 = vunpack.c.h.b16 %v49
    %v100 = vpack.c.b16 %v98, %v96
    %v101 = vpack.c.b16 %v99, %v97
    %v136 = vunpack.c.l.b16 %v50
    %v137 = vunpack.c.h.b16 %v50
    %v138 = vunpack.c.l.b16 %v51
    %v139 = vunpack.c.h.b16 %v51
    %v140 = vunpack.c.l.b16 %v52
    %v141 = vunpack.c.h.b16 %v52
    %v142 = vunpack.c.l.b16 %v53
    %v143 = vunpack.c.h.b16 %v53
    %v144 = vunpack.c.l.b16 %v54
    %v145 = vunpack.c.h.b16 %v54
    %v146 = vunpack.c.l.b16 %v55
    %v147 = vunpack.c.h.b16 %v55
    %v148 = vunpack.c.l.b16 %v56
    %v149 = vunpack.c.h.b16 %v56
    %v150 = vunpack.c.l.b16 %v57
    %v151 = vunpack.c.h.b16 %v57
    %v152 = vunpack.c.l.b16 %v58
    %v153 = vunpack.c.h.b16 %v58
    %v154 = vunpack.c.l.b16 %v59
    %v155 = vunpack.c.h.b16 %v59
    %v156 = vunpack.c.l.b16 %v60
    %v157 = vunpack.c.h.b16 %v60
    %v158 = vunpack.c.l.b16 %v61
    %v159 = vunpack.c.h.b16 %v61
    %v160 = vunpack.c.l.b16 %v62
    %v161 = vunpack.c.h.b16 %v62
    %v162 = vunpack.c.l.b16 %v63
    %v163 = vunpack.c.h.b16 %v63
    %v164 = vunpack.c.l.b16 %v64
    %v165 = vunpack.c.h.b16 %v64
    %v166 = vunpack.c.l.b16 %v65
    %v167 = vunpack.c.h.b16 %v65
    %v168 = vunpack.c.l.b16 %v66
    %v169 = vunpack.c.h.b16 %v66
    %v170 = vunpack.c.l.b16 %v67
    %v171 = vunpack.c.h.b16 %v67
    %v172 = vunpack.c.l.b16 %v68
    %v173 = vunpack.c.h.b16 %v68
    %v174 = vunpack.c.l.b16 %v69
    %v175 = vunpack.c.h.b16 %v69
    %v176 = vunpack.c.l.b16 %v70
    %v177 = vunpack.c.h.b16 %v70
    %v178 = vunpack.c.l.b16 %v71
    %v179 = vunpack.c.h.b16 %v71
    %v180 = vunpack.c.l.b16 %v72
    %v181 = vunpack.c.h.b16 %v72
    %v182 = vunpack.c.l.b16 %v73
    %v183 = vunpack.c.h.b16 %v73
    %v184 = vunpack.c.l.b16 %v74
    %v185 = vunpack.c.h.b16 %v74
    %v186 = vunpack.c.l.b16 %v75
    %v187 = vunpack.c.h.b16 %v75
    %v188 = vunpack.c.l.b16 %v76
    %v189 = vunpack.c.h.b16 %v76
    %v190 = vunpack.c.l.b16 %v77
    %v191 = vunpack.c.h.b16 %v77
    %v192 = vunpack.c.l.b16 %v78
    %v193 = vunpack.c.h.b16 %v78
    %v194 = vunpack.c.l.b16 %v79
    %v195 = vunpack.c.h.b16 %v79
    %v196 = vunpack.c.l.b16 %v80
    %v197 = vunpack.c.h.b16 %v80
    %v198 = vunpack.c.l.b16 %v81
    %v199 = vunpack.c.h.b16 %v81
    %v200 = vpack.c.b16 %v138, %v136
    %v201 = vpack.c.b16 %v139, %v137
    %v202 = vpack.c.b16 %v142, %v140
    %v203 = vpack.c.b16 %v143, %v141
    %v204 = vpack.c.b16 %v146, %v144
    %v205 = vpack.c.b16 %v147, %v145
    %v206 = vpack.c.b16 %v150, %v148
    %v207 = vpack.c.b16 %v151, %v149
    %v208 = vpack.c.b16 %v154, %v152
    %v209 = vpack.c.b16 %v155, %v153
    %v210 = vpack.c.b16 %v158, %v156
    %v211 = vpack.c.b16 %v159, %v157
    %v212 = vpack.c.b16 %v162, %v160
    %v213 = vpack.c.b16 %v163, %v161
    %v214 = vpack.c.b16 %v166, %v164
    %v215 = vpack.c.b16 %v167, %v165
    %v216 = vpack.c.b16 %v170, %v168
    %v217 = vpack.c.b16 %v171, %v169
    %v218 = vpack.c.b16 %v174, %v172
    %v219 = vpack.c.b16 %v175, %v173
    %v220 = vpack.c.b16 %v178, %v176
    %v221 = vpack.c.b16 %v179, %v177
    %v222 = vpack.c.b16 %v182, %v180
    %v223 = vpack.c.b16 %v183, %v181
    %v224 = vpack.c.b16 %v186, %v184
    %v225 = vpack.c.b16 %v187, %v185
    %v226 = vpack.c.b16 %v190, %v188
    %v227 = vpack.c.b16 %v191, %v189
    %v228 = vpack.c.b16 %v194, %v192
    %v229 = vpack.c.b16 %v195, %v193
    %v230 = vpack.c.b16 %v198, %v196
    %v231 = vpack.c.b16 %v199, %v197
    %264 = vmatprep.subr.bf16.mxu0 %v215
    %265 = vmatpush1.bf16.msra.mxu0 %v214
    %266 = vmatprep.subr.bf16.mxu0 %v213
    %267 = vmatpush1.bf16.msra.mxu0 %v212
    %268 = vmatprep.subr.bf16.mxu0 %v211
    %269 = vmatpush1.bf16.msra.mxu0 %v210
    %270 = vmatprep.subr.bf16.mxu0 %v209
    %271 = vmatpush1.bf16.msra.mxu0 %v208
    %272 = vmatprep.subr.bf16.mxu0 %v207
    %273 = vmatpush1.bf16.msra.mxu0 %v206
    %274 = vmatprep.subr.bf16.mxu0 %v205
    %275 = vmatpush1.bf16.msra.mxu0 %v204
    %276 = vmatprep.subr.bf16.mxu0 %v203
    %277 = vmatpush1.bf16.msra.mxu0 %v202
    %278 = vmatprep.subr.bf16.mxu0 %v201
    %279 = vmatpush1.bf16.msra.mxu0 %v200
    %280 = vmatprep.subr.bf16.mxu0 %v231
    %281 = vmatpush2.bf16.msra.mxu0 %v230
    %282 = vmatprep.subr.bf16.mxu0 %v229
    %283 = vmatpush2.bf16.msra.mxu0 %v228
    %284 = vmatprep.subr.bf16.mxu0 %v227
    %285 = vmatpush2.bf16.msra.mxu0 %v226
    %286 = vmatprep.subr.bf16.mxu0 %v225
    %287 = vmatpush2.bf16.msra.mxu0 %v224
    %288 = vmatprep.subr.bf16.mxu0 %v223
    %289 = vmatpush2.bf16.msra.mxu0 %v222
    %290 = vmatprep.subr.bf16.mxu0 %v221
    %291 = vmatpush2.bf16.msra.mxu0 %v220
    %292 = vmatprep.subr.bf16.mxu0 %v219
    %293 = vmatpush2.bf16.msra.mxu0 %v218
    %294 = vmatprep.subr.bf16.mxu0 %v217
    %295 = vmatpush2.bf16.msra.mxu0 %v216
    %296 = vmatprep.mubr.bf16.mxu0 %v101
    %297 = vmatmul.mubr.bf16.gmra.mxu0 %v100
    %v298 = vpop.f32.mrf.mxu0
    %v299 = vadd.f32 %v87, %v298
    %v300 = vpop.f32.mrf.mxu0
    %v301 = vadd.f32 %v91, %v300
    %v302 = vpop.f32.mrf.mxu0
    %v303 = vadd.f32 %v87, %v302
    %v304 = vpop.f32.mrf.mxu0
    %v305 = vadd.f32 %v91, %v304
    %306 = vdwg.mxu0
    %v307 = vpack.c.bf16 %v303, %v299
    %v308 = vpack.c.bf16 %v305, %v301
    %v309 = vld [vmem:[#allocation4] sm:$0xff]
    %v310 = vld [vmem:[#allocation4 + $0x8] sm:$0xff]
    %v311 = vld [vmem:[#allocation4 + $0x10] sm:$0xff]
    %v312 = vld [vmem:[#allocation4 + $0x18] sm:$0xff]
    %v313 = vld [vmem:[#allocation4 + $0x20] sm:$0xff]
    %v314 = vld [vmem:[#allocation4 + $0x28] sm:$0xff]
    %v315 = vld [vmem:[#allocation4 + $0x30] sm:$0xff]
    %v316 = vld [vmem:[#allocation4 + $0x38] sm:$0xff]
    %v317 = vld [vmem:[#allocation4 + $0x40] sm:$0xff]
    %v318 = vld [vmem:[#allocation4 + $0x48] sm:$0xff]
    %v319 = vld [vmem:[#allocation4 + $0x50] sm:$0xff]
    %v320 = vld [vmem:[#allocation4 + $0x58] sm:$0xff]
    %v321 = vld [vmem:[#allocation4 + $0x60] sm:$0xff]
    %v322 = vld [vmem:[#allocation4 + $0x68] sm:$0xff]
    %v323 = vld [vmem:[#allocation4 + $0x70] sm:$0xff]
    %v324 = vld [vmem:[#allocation4 + $0x78] sm:$0xff]
    %v325 = vld [vmem:[#allocation4 + $0x80] sm:$0xff]
    %v326 = vld [vmem:[#allocation4 + $0x88] sm:$0xff]
    %v327 = vld [vmem:[#allocation4 + $0x90] sm:$0xff]
    %v328 = vld [vmem:[#allocation4 + $0x98] sm:$0xff]
    %v329 = vld [vmem:[#allocation4 + $0xa0] sm:$0xff]
    %v330 = vld [vmem:[#allocation4 + $0xa8] sm:$0xff]
    %v331 = vld [vmem:[#allocation4 + $0xb0] sm:$0xff]
    %v332 = vld [vmem:[#allocation4 + $0xb8] sm:$0xff]
    %v333 = vld [vmem:[#allocation4 + $0xc0] sm:$0xff]
    %v334 = vld [vmem:[#allocation4 + $0xc8] sm:$0xff]
    %v335 = vld [vmem:[#allocation4 + $0xd0] sm:$0xff]
    %v336 = vld [vmem:[#allocation4 + $0xd8] sm:$0xff]
    %v337 = vld [vmem:[#allocation4 + $0xe0] sm:$0xff]
    %v338 = vld [vmem:[#allocation4 + $0xe8] sm:$0xff]
    %v339 = vld [vmem:[#allocation4 + $0xf0] sm:$0xff]
    %v340 = vld [vmem:[#allocation4 + $0xf8] sm:$0xff]
    %v341 = vld [vmem:[%s4] sm:$0x3]
    %v343 = vlaneseq
    %v344 = vshrl.u32 %v343, 7
    %v345 = vsub.s32 0, %v344
    %v346 = vrot.slane %v341, %v345
    %v347 = vlaneseq
    %v348 = vshrl.u32 %v347, 7
    %v349 = vsub.s32 1, %v348
    %v350 = vrot.slane %v341, %v349
    %v385 = vunpack.c.l.b16 %v309
    %v386 = vunpack.c.h.b16 %v309
    %v387 = vunpack.c.l.b16 %v310
    %v388 = vunpack.c.h.b16 %v310
    %v389 = vunpack.c.l.b16 %v311
    %v390 = vunpack.c.h.b16 %v311
    %v391 = vunpack.c.l.b16 %v312
    %v392 = vunpack.c.h.b16 %v312
    %v393 = vunpack.c.l.b16 %v313
    %v394 = vunpack.c.h.b16 %v313
    %v395 = vunpack.c.l.b16 %v314
    %v396 = vunpack.c.h.b16 %v314
    %v397 = vunpack.c.l.b16 %v315
    %v398 = vunpack.c.h.b16 %v315
    %v399 = vunpack.c.l.b16 %v316
    %v400 = vunpack.c.h.b16 %v316
    %v401 = vunpack.c.l.b16 %v317
    %v402 = vunpack.c.h.b16 %v317
    %v403 = vunpack.c.l.b16 %v318
    %v404 = vunpack.c.h.b16 %v318
    %v405 = vunpack.c.l.b16 %v319
    %v406 = vunpack.c.h.b16 %v319
    %v407 = vunpack.c.l.b16 %v320
    %v408 = vunpack.c.h.b16 %v320
    %v409 = vunpack.c.l.b16 %v321
    %v410 = vunpack.c.h.b16 %v321
    %v411 = vunpack.c.l.b16 %v322
    %v412 = vunpack.c.h.b16 %v322
    %v413 = vunpack.c.l.b16 %v323
    %v414 = vunpack.c.h.b16 %v323
    %v415 = vunpack.c.l.b16 %v324
    %v416 = vunpack.c.h.b16 %v324
    %v417 = vunpack.c.l.b16 %v325
    %v418 = vunpack.c.h.b16 %v325
    %v419 = vunpack.c.l.b16 %v326
    %v420 = vunpack.c.h.b16 %v326
    %v421 = vunpack.c.l.b16 %v327
    %v422 = vunpack.c.h.b16 %v327
    %v423 = vunpack.c.l.b16 %v328
    %v424 = vunpack.c.h.b16 %v328
    %v425 = vunpack.c.l.b16 %v329
    %v426 = vunpack.c.h.b16 %v329
    %v427 = vunpack.c.l.b16 %v330
    %v428 = vunpack.c.h.b16 %v330
    %v429 = vunpack.c.l.b16 %v331
    %v430 = vunpack.c.h.b16 %v331
    %v431 = vunpack.c.l.b16 %v332
    %v432 = vunpack.c.h.b16 %v332
    %v433 = vunpack.c.l.b16 %v333
    %v434 = vunpack.c.h.b16 %v333
    %v435 = vunpack.c.l.b16 %v334
    %v436 = vunpack.c.h.b16 %v334
    %v437 = vunpack.c.l.b16 %v335
    %v438 = vunpack.c.h.b16 %v335
    %v439 = vunpack.c.l.b16 %v336
    %v440 = vunpack.c.h.b16 %v336
    %v441 = vunpack.c.l.b16 %v337
    %v442 = vunpack.c.h.b16 %v337
    %v443 = vunpack.c.l.b16 %v338
    %v444 = vunpack.c.h.b16 %v338
    %v445 = vunpack.c.l.b16 %v339
    %v446 = vunpack.c.h.b16 %v339
    %v447 = vunpack.c.l.b16 %v340
    %v448 = vunpack.c.h.b16 %v340
    %v449 = vpack.c.b16 %v387, %v385
    %v450 = vpack.c.b16 %v388, %v386
    %v451 = vpack.c.b16 %v391, %v389
    %v452 = vpack.c.b16 %v392, %v390
    %v453 = vpack.c.b16 %v395, %v393
    %v454 = vpack.c.b16 %v396, %v394
    %v455 = vpack.c.b16 %v399, %v397
    %v456 = vpack.c.b16 %v400, %v398
    %v457 = vpack.c.b16 %v403, %v401
    %v458 = vpack.c.b16 %v404, %v402
    %v459 = vpack.c.b16 %v407, %v405
    %v460 = vpack.c.b16 %v408, %v406
    %v461 = vpack.c.b16 %v411, %v409
    %v462 = vpack.c.b16 %v412, %v410
    %v463 = vpack.c.b16 %v415, %v413
    %v464 = vpack.c.b16 %v416, %v414
    %v465 = vpack.c.b16 %v419, %v417
    %v466 = vpack.c.b16 %v420, %v418
    %v467 = vpack.c.b16 %v423, %v421
    %v468 = vpack.c.b16 %v424, %v422
    %v469 = vpack.c.b16 %v427, %v425
    %v470 = vpack.c.b16 %v428, %v426
    %v471 = vpack.c.b16 %v431, %v429
    %v472 = vpack.c.b16 %v432, %v430
    %v473 = vpack.c.b16 %v435, %v433
    %v474 = vpack.c.b16 %v436, %v434
    %v475 = vpack.c.b16 %v439, %v437
    %v476 = vpack.c.b16 %v440, %v438
    %v477 = vpack.c.b16 %v443, %v441
    %v478 = vpack.c.b16 %v444, %v442
    %v479 = vpack.c.b16 %v447, %v445
    %v480 = vpack.c.b16 %v448, %v446
    %513 = vmatprep.subr.bf16.mxu0 %v464
    %514 = vmatpush1.bf16.msra.mxu0 %v463
    %515 = vmatprep.subr.bf16.mxu0 %v462
    %516 = vmatpush1.bf16.msra.mxu0 %v461
    %517 = vmatprep.subr.bf16.mxu0 %v460
    %518 = vmatpush1.bf16.msra.mxu0 %v459
    %519 = vmatprep.subr.bf16.mxu0 %v458
    %520 = vmatpush1.bf16.msra.mxu0 %v457
    %521 = vmatprep.subr.bf16.mxu0 %v456
    %522 = vmatpush1.bf16.msra.mxu0 %v455
    %523 = vmatprep.subr.bf16.mxu0 %v454
    %524 = vmatpush1.bf16.msra.mxu0 %v453
    %525 = vmatprep.subr.bf16.mxu0 %v452
    %526 = vmatpush1.bf16.msra.mxu0 %v451
    %527 = vmatprep.subr.bf16.mxu0 %v450
    %528 = vmatpush1.bf16.msra.mxu0 %v449
    %529 = vmatprep.subr.bf16.mxu0 %v480
    %530 = vmatpush2.bf16.msra.mxu0 %v479
    %531 = vmatprep.subr.bf16.mxu0 %v478
    %532 = vmatpush2.bf16.msra.mxu0 %v477
    %533 = vmatprep.subr.bf16.mxu0 %v476
    %534 = vmatpush2.bf16.msra.mxu0 %v475
    %535 = vmatprep.subr.bf16.mxu0 %v474
    %536 = vmatpush2.bf16.msra.mxu0 %v473
    %537 = vmatprep.subr.bf16.mxu0 %v472
    %538 = vmatpush2.bf16.msra.mxu0 %v471
    %539 = vmatprep.subr.bf16.mxu0 %v470
    %540 = vmatpush2.bf16.msra.mxu0 %v469
    %541 = vmatprep.subr.bf16.mxu0 %v468
    %542 = vmatpush2.bf16.msra.mxu0 %v467
    %543 = vmatprep.subr.bf16.mxu0 %v466
    %544 = vmatpush2.bf16.msra.mxu0 %v465
    %545 = vmatprep.mubr.bf16.mxu0 %v308
    %546 = vmatmul.mubr.bf16.gmra.mxu0 %v307
    %v547 = vpop.f32.mrf.mxu0
    %v548 = vadd.f32 %v346, %v547
    %v549 = vpop.f32.mrf.mxu0
    %v550 = vadd.f32 %v350, %v549
    %v551 = vpop.f32.mrf.mxu0
    %v552 = vadd.f32 %v346, %v551
    %v553 = vpop.f32.mrf.mxu0
    %v554 = vadd.f32 %v350, %v553
    %555 = vdwg.mxu0
    %556 = vst [vmem:[%s5] sm:$0xff] %v548
    %557 = vst [vmem:[%s5 + $0x8] sm:$0xff] %v550
    %558 = vst [vmem:[%s5 + $0x10] sm:$0xff] %v552
    %559 = vst [vmem:[%s5 + $0x18] sm:$0xff] %v554
    // Predicated region
    $region30: #{linear_regression_forward.1} parent=1 // pred_check
      _
    $region31: #{linear_regression_forward.1} parent=1 // pred_check_branch
      %561 = sbr.rel (0) target = $region33
    $region32: #{linear_regression_forward.1} parent=1 // pred_region
      _
    $region33: #{linear_regression_forward.1} parent=1 // pred_fallthru
      _
    // Predicated region
    $region34: #{linear_regression_forward.1} parent=1 // pred_check
      _
    $region35: #{linear_regression_forward.1} parent=1 // pred_check_branch
      %563 = sbr.rel (0) target = $region37
    $region36: #{linear_regression_forward.1} parent=1 // pred_region
      _
    $region37: #{linear_regression_forward.1} parent=1 // pred_fallthru
      _
    %564 = vsyncpa [#allocation3], 1
    %565 = vsyncpa [#allocation5], 1

</llo_original>
